<compile_context>
chip_gen: v5e
topology: v5e:2x2
jax: 0.10.0
libtpu: 0.0.40
codegen_flags: <defaults>
</compile_context>

<pallas_src>
import functools

import jax
import jax.numpy as jnp
from jax.experimental import pallas as pl
from jax.experimental.pallas import tpu as pltpu


def _round_up(x, m):
    return ((x + m - 1) // m) * m


def _contrastive_kernel(x0_ref, x1_ref, y_ref, out_ref, *,
                        margin, batch, tile_b, ragged):
    i = pl.program_id(0)

    # Native-dtype loads; widen on the VPU (halves HBM traffic for bf16 inputs).
    x0 = x0_ref[...].astype(jnp.float32)                      # (TB, D)
    x1 = x1_ref[...].astype(jnp.float32)                      # (TB, D)
    diff = x0 - x1
    dist_sq = jnp.sum(diff * diff, axis=1, keepdims=True)     # (TB, 1) lane reduce
    dist = jnp.sqrt(dist_sq)
    clamped = jnp.maximum(margin - dist, 0.0)                  # torch.clamp(min=0)
    c2 = clamped * clamped                                     # (TB, 1)
    y = y_ref[...].astype(jnp.float32)                         # (1, TB) lane-dense

    def write_partial(yv, dsqv, c2v):
        # sum_i [y*dsq + (1-y)*c2] == dot(y, dsq - c2) + sum(c2).
        # (1,TB)@(TB,1) rides the otherwise-idle MXU; HIGHEST keeps f32 accuracy.
        term_y = jnp.dot(yv, dsqv - c2v,
                         preferred_element_type=jnp.float32,
                         precision=jax.lax.Precision.HIGHEST)   # (1, 1)
        partial = jnp.sum(term_y) + jnp.sum(c2v)
        # One lane-dense (8,128) block per tile: partial at [0,0], exact zeros
        # elsewhere, so the wrapper can jnp.sum the whole output.
        r = jax.lax.broadcasted_iota(jnp.int32, (8, 128), 0)
        l = jax.lax.broadcasted_iota(jnp.int32, (8, 128), 1)
        out_ref[...] = jnp.where((r == 0) & (l == 0), partial, 0.0)

    if not ragged:
        # Every tile is full: no masking work at all.
        write_partial(y, dist_sq, c2)
    else:
        last = pl.num_programs(0) - 1

        @pl.when(i < last)
        def _():
            write_partial(y, dist_sq, c2)

        @pl.when(i == last)
        def _():
            # Rows >= batch hold unspecified data (possibly NaN/Inf); zero both
            # the per-row columns and the lane-dense labels BEFORE any reduce.
            valid = batch - i * tile_b
            row_ok = jax.lax.broadcasted_iota(jnp.int32, (tile_b, 1), 0) < valid
            lane_ok = jax.lax.broadcasted_iota(jnp.int32, (1, tile_b), 1) < valid
            write_partial(jnp.where(lane_ok, y, 0.0),
                          jnp.where(row_ok, dist_sq, 0.0),
                          jnp.where(row_ok, c2, 0.0))


def _pick_tile_and_vmem(B, D, x_itemsize, y_itemsize):
    """Chip-aware batch tile + scoped-VMEM limit (bytes-targeted, not row-capped)."""
    try:
        info = pltpu.get_tpu_info()
        vmem_cap = int(getattr(info, "vmem_capacity_bytes", 64 * 1024 * 1024))
    except Exception:  # no TPU info available: assume the smallest (v7x per-TC)
        vmem_cap = 64 * 1024 * 1024
    budget = vmem_cap // 6        # 2 inputs x 2 pipeline buffers target
    vmem_limit = vmem_cap // 2    # headroom for f32 widen temps + compiler scratch
    lane_d = _round_up(D, 128)    # VMEM lane padding of the feature dim
    per_row = 2 * 2 * lane_d * x_itemsize + 2 * 8 * y_itemsize
    tb = max(128, (budget // per_row) // 128 * 128)   # mult. of 128 (lane-dense y)
    b_ceil = _round_up(B, 128)
    tb = min(tb, b_ceil)
    # v7x: give both TensorCores a 'parallel' tile when the blocks stay big
    # enough to amortize the per-step overhead (no-op on 1-TC v5e/v6e).
    if tb == b_ceil and b_ceil >= 256:
        half = _round_up(b_ceil // 2, 128)
        if half * D * x_itemsize >= 512 * 1024:
            tb = half
    return tb, vmem_limit


def contrastive_loss(x0, x1, y, margin=1.0):
    """Pallas equivalent of ContrastiveLoss.forward. Returns a scalar float32."""
    assert x0.shape == x1.shape and x0.ndim == 2
    B, D = x0.shape
    y2d = y.reshape(1, B)   # lane-dense labels

    TB, vmem_limit = _pick_tile_and_vmem(B, D,
                                         jnp.dtype(x0.dtype).itemsize,
                                         jnp.dtype(y2d.dtype).itemsize)
    num_tiles = pl.cdiv(B, TB)
    ragged = (B % TB) != 0

    kernel = functools.partial(_contrastive_kernel, margin=float(margin),
                               batch=B, tile_b=TB, ragged=ragged)

    bytes_accessed = (2 * B * D * jnp.dtype(x0.dtype).itemsize
                      + B * jnp.dtype(y2d.dtype).itemsize
                      + num_tiles * 8 * 128 * 4)

    partials = pl.pallas_call(
        kernel,
        out_shape=jax.ShapeDtypeStruct((num_tiles * 8, 128), jnp.float32),
        grid=(num_tiles,),
        in_specs=[
            pl.BlockSpec((TB, D), lambda i: (i, 0)),
            pl.BlockSpec((TB, D), lambda i: (i, 0)),
            pl.BlockSpec((1, TB), lambda i: (0, i)),
        ],
        out_specs=pl.BlockSpec((8, 128), lambda i: (i, 0)),
        compiler_params=pltpu.CompilerParams(
            dimension_semantics=("parallel",),
            vmem_limit_bytes=int(vmem_limit),
        ),
        cost_estimate=pl.CostEstimate(
            flops=4 * B * D,
            transcendentals=B,
            bytes_accessed=int(bytes_accessed),
        ),
    )(x0, x1, y2d)

    # Tiny epilogue: sum per-tile partials (zeros elsewhere) + fused 0.5/B scale.
    return jnp.sum(partials) * (jnp.float32(0.5) / jnp.float32(B))


def _reference(x0, x1, y, margin=1.0):
    diff = x0.astype(jnp.float32) - x1.astype(jnp.float32)
    dist_sq = jnp.sum(diff ** 2, axis=1)
    dist = jnp.sqrt(dist_sq)
    mdist = margin - dist
    clamped = jnp.maximum(mdist, 0.0)
    yf = y.astype(jnp.float32)
    loss = yf * dist_sq + (1.0 - yf) * clamped ** 2
    return jnp.sum(loss) / 2.0 / x0.shape[0]


if __name__ == "__main__":
    key = jax.random.PRNGKey(0)
    k0, k1, k2 = jax.random.split(key, 3)

    # Small shapes consistent with the module: a batch of paired embeddings.
    B, D = 8, 32
    x0 = jax.random.normal(k0, (B, D), dtype=jnp.float32)
    x1 = jax.random.normal(k1, (B, D), dtype=jnp.float32)
    y = jax.random.bernoulli(k2, 0.5, (B,)).astype(jnp.float32)

    out = contrastive_loss(x0, x1, y, margin=1.0)
    jax.block_until_ready(out)
    ref = _reference(x0, x1, y, margin=1.0)
    assert jnp.allclose(out, ref, rtol=1e-5, atol=1e-5), (out, ref)

    # Ragged batch: padded rows (unspecified data) must contribute exactly 0.
    Br = 6
    out_r = contrastive_loss(x0[:Br], x1[:Br], y[:Br], margin=1.0)
    jax.block_until_ready(out_r)
    ref_r = _reference(x0[:Br], x1[:Br], y[:Br], margin=1.0)
    assert jnp.allclose(out_r, ref_r, rtol=1e-5, atol=1e-5), (out_r, ref_r)

    # Multi-tile 'parallel' path (>= 2 grid steps, no ragged masking).
    B2, D2 = 2048, 128
    k3, k4, k5 = jax.random.split(k2, 3)
    x0b = jax.random.normal(k3, (B2, D2), dtype=jnp.float32)
    x1b = jax.random.normal(k4, (B2, D2), dtype=jnp.float32)
    yb = jax.random.bernoulli(k5, 0.5, (B2,)).astype(jnp.float32)
    out_b = contrastive_loss(x0b, x1b, yb, margin=1.0)
    jax.block_until_ready(out_b)
    ref_b = _reference(x0b, x1b, yb, margin=1.0)
    assert jnp.allclose(out_b, ref_b, rtol=1e-4, atol=1e-4), (out_b, ref_b)

    print("KERNEL_OK")
</pallas_src>

<mosaic_0001>
module attributes {stable_mosaic.version = 11 : i64} {
  func.func @_contrastive_kernel(%arg0: i32, %arg1: memref<128x32xf32, #tpu.memory_space<vmem>>, %arg2: memref<128x32xf32, #tpu.memory_space<vmem>>, %arg3: memref<1x128xf32, #tpu.memory_space<vmem>>, %arg4: memref<8x128xf32, #tpu.memory_space<vmem>>) attributes {dimension_semantics = [#tpu.dimension_semantics<parallel>], iteration_bounds = array<i64: 1>, scalar_prefetch = 0 : i64, scratch_operands = 0 : i64, tpu.core_type = #tpu.core_type<tc>, window_params = [{transform_indices = @transform_0, window_bounds = array<i64: 128, 32>}, {transform_indices = @transform_1, window_bounds = array<i64: 128, 32>}, {transform_indices = @transform_2, window_bounds = array<i64: 1, 128>}, {transform_indices = @transform_3, window_bounds = array<i64: 8, 128>}]} {
    %c0 = arith.constant 0 : index
    %c0_0 = arith.constant 0 : index
    %0 = vector.load %arg1[%c0, %c0_0] : memref<128x32xf32, #tpu.memory_space<vmem>>, vector<128x32xf32>
    %c0_1 = arith.constant 0 : index
    %c0_2 = arith.constant 0 : index
    %1 = vector.load %arg2[%c0_1, %c0_2] : memref<128x32xf32, #tpu.memory_space<vmem>>, vector<128x32xf32>
    %2 = arith.subf %0, %1 : vector<128x32xf32>
    %3 = arith.mulf %2, %2 : vector<128x32xf32>
    %cst = arith.constant dense<0.000000e+00> : vector<128xf32>
    %4 = vector.multi_reduction <add>, %3, %cst [1] : vector<128x32xf32> to vector<128xf32>
    %5 = vector.shape_cast %4 : vector<128xf32> to vector<128x1xf32>
    %6 = math.sqrt %5 : vector<128x1xf32>
    %cst_3 = arith.constant 1.000000e+00 : f32
    %7 = vector.broadcast %cst_3 : f32 to vector<128x1xf32>
    %8 = arith.subf %7, %6 : vector<128x1xf32>
    %cst_4 = arith.constant 0.000000e+00 : f32
    %9 = vector.broadcast %cst_4 : f32 to vector<128x1xf32>
    %10 = arith.maximumf %8, %9 : vector<128x1xf32>
    %11 = arith.mulf %10, %10 : vector<128x1xf32>
    %c0_5 = arith.constant 0 : index
    %c0_6 = arith.constant 0 : index
    %12 = vector.load %arg3[%c0_5, %c0_6] : memref<1x128xf32, #tpu.memory_space<vmem>>, vector<1x128xf32>
    %c0_i32 = arith.constant 0 : i32
    %13 = arith.cmpi slt, %arg0, %c0_i32 : i32
    %14 = arith.extui %13 : i1 to i32
    %c0_i32_7 = arith.constant 0 : i32
    %15 = arith.cmpi ne, %14, %c0_i32_7 : i32
    scf.if %15 {
      %19 = arith.subf %5, %11 : vector<128x1xf32>
      %cst_10 = arith.constant dense<0.000000e+00> : vector<1x1xf32>
      %20 = tpu.matmul %12, %19, %cst_10 {dimension_numbers = #tpu.dot_dimension_numbers<[1], [0], [0], [1], [0, 0, 1, 1], [], []>, precision = #tpu.contract_precision<fp32>} : vector<1x128xf32>, vector<128x1xf32>, vector<1x1xf32> -> vector<1x1xf32>
      %21 = vector.shape_cast %20 : vector<1x1xf32> to vector<1x1x1xf32>
      %cst_11 = arith.constant dense<0.000000e+00> : vector<1xf32>
      %22 = vector.multi_reduction <add>, %21, %cst_11 [1, 2] : vector<1x1x1xf32> to vector<1xf32>
      %23 = vector.shape_cast %22 : vector<1xf32> to vector<1x1x1xf32>
      %24 = vector.extract %23[0, 0, 0] : f32 from vector<1x1x1xf32>
      %25 = vector.shape_cast %11 : vector<128x1xf32> to vector<1x128x1xf32>
      %cst_12 = arith.constant dense<0.000000e+00> : vector<1xf32>
      %26 = vector.multi_reduction <add>, %25, %cst_12 [1, 2] : vector<1x128x1xf32> to vector<1xf32>
      %27 = vector.shape_cast %26 : vector<1xf32> to vector<1x1x1xf32>
      %28 = vector.extract %27[0, 0, 0] : f32 from vector<1x1x1xf32>
      %29 = arith.addf %24, %28 : f32
      %30 = tpu.iota {dimensions = array<i32: 0>} : vector<8x128xi32>
      %31 = tpu.iota {dimensions = array<i32: 1>} : vector<8x128xi32>
      %c0_i32_13 = arith.constant 0 : i32
      %32 = vector.broadcast %c0_i32_13 : i32 to vector<8x128xi32>
      %33 = arith.cmpi eq, %30, %32 : vector<8x128xi32>
      %c0_i32_14 = arith.constant 0 : i32
      %34 = vector.broadcast %c0_i32_14 : i32 to vector<8x128xi32>
      %35 = arith.cmpi eq, %31, %34 : vector<8x128xi32>
      %36 = arith.andi %33, %35 : vector<8x128xi1>
      %cst_15 = arith.constant 0.000000e+00 : f32
      %37 = vector.broadcast %29 : f32 to vector<8x128xf32>
      %38 = vector.broadcast %cst_15 : f32 to vector<8x128xf32>
      %39 = arith.select %36, %37, %38 : vector<8x128xi1>, vector<8x128xf32>
      %c0_16 = arith.constant 0 : index
      %c0_17 = arith.constant 0 : index
      %40 = vector.load %arg4[%c0_16, %c0_17] : memref<8x128xf32, #tpu.memory_space<vmem>>, vector<8x128xf32>
      tpu.vector_store %arg4[%c0_16, %c0_17], %39 {strides = array<i32>} : memref<8x128xf32, #tpu.memory_space<vmem>>, vector<8x128xf32>,
    } else {
    }
    %c0_i32_8 = arith.constant 0 : i32
    %16 = arith.cmpi eq, %arg0, %c0_i32_8 : i32
    %17 = arith.extui %16 : i1 to i32
    %c0_i32_9 = arith.constant 0 : i32
    %18 = arith.cmpi ne, %17, %c0_i32_9 : i32
    scf.if %18 {
      %c128_i32 = arith.constant 128 : i32
      %19 = arith.muli %arg0, %c128_i32 : i32
      %c8_i32 = arith.constant 8 : i32
      %20 = arith.subi %c8_i32, %19 : i32
      %21 = tpu.iota {dimensions = array<i32: 0>} : vector<128x1xi32>
      %22 = vector.broadcast %20 : i32 to vector<128x1xi32>
      %23 = arith.cmpi slt, %21, %22 : vector<128x1xi32>
      %24 = tpu.iota {dimensions = array<i32: 1>} : vector<1x128xi32>
      %25 = vector.broadcast %20 : i32 to vector<1x128xi32>
      %26 = arith.cmpi slt, %24, %25 : vector<1x128xi32>
      %cst_10 = arith.constant 0.000000e+00 : f32
      %27 = vector.broadcast %cst_10 : f32 to vector<1x128xf32>
      %28 = arith.select %26, %12, %27 : vector<1x128xi1>, vector<1x128xf32>
      %cst_11 = arith.constant 0.000000e+00 : f32
      %29 = vector.broadcast %cst_11 : f32 to vector<128x1xf32>
      %30 = arith.select %23, %5, %29 : vector<128x1xi1>, vector<128x1xf32>
      %cst_12 = arith.constant 0.000000e+00 : f32
      %31 = vector.broadcast %cst_12 : f32 to vector<128x1xf32>
      %32 = arith.select %23, %11, %31 : vector<128x1xi1>, vector<128x1xf32>
      %33 = arith.subf %30, %32 : vector<128x1xf32>
      %cst_13 = arith.constant dense<0.000000e+00> : vector<1x1xf32>
      %34 = tpu.matmul %28, %33, %cst_13 {dimension_numbers = #tpu.dot_dimension_numbers<[1], [0], [0], [1], [0, 0, 1, 1], [], []>, precision = #tpu.contract_precision<fp32>} : vector<1x128xf32>, vector<128x1xf32>, vector<1x1xf32> -> vector<1x1xf32>
      %35 = vector.shape_cast %34 : vector<1x1xf32> to vector<1x1x1xf32>
      %cst_14 = arith.constant dense<0.000000e+00> : vector<1xf32>
      %36 = vector.multi_reduction <add>, %35, %cst_14 [1, 2] : vector<1x1x1xf32> to vector<1xf32>
      %37 = vector.shape_cast %36 : vector<1xf32> to vector<1x1x1xf32>
      %38 = vector.extract %37[0, 0, 0] : f32 from vector<1x1x1xf32>
      %39 = vector.shape_cast %32 : vector<128x1xf32> to vector<1x128x1xf32>
      %cst_15 = arith.constant dense<0.000000e+00> : vector<1xf32>
      %40 = vector.multi_reduction <add>, %39, %cst_15 [1, 2] : vector<1x128x1xf32> to vector<1xf32>
      %41 = vector.shape_cast %40 : vector<1xf32> to vector<1x1x1xf32>
      %42 = vector.extract %41[0, 0, 0] : f32 from vector<1x1x1xf32>
      %43 = arith.addf %38, %42 : f32
      %44 = tpu.iota {dimensions = array<i32: 0>} : vector<8x128xi32>
      %45 = tpu.iota {dimensions = array<i32: 1>} : vector<8x128xi32>
      %c0_i32_16 = arith.constant 0 : i32
      %46 = vector.broadcast %c0_i32_16 : i32 to vector<8x128xi32>
      %47 = arith.cmpi eq, %44, %46 : vector<8x128xi32>
      %c0_i32_17 = arith.constant 0 : i32
      %48 = vector.broadcast %c0_i32_17 : i32 to vector<8x128xi32>
      %49 = arith.cmpi eq, %45, %48 : vector<8x128xi32>
      %50 = arith.andi %47, %49 : vector<8x128xi1>
      %cst_18 = arith.constant 0.000000e+00 : f32
      %51 = vector.broadcast %43 : f32 to vector<8x128xf32>
      %52 = vector.broadcast %cst_18 : f32 to vector<8x128xf32>
      %53 = arith.select %50, %51, %52 : vector<8x128xi1>, vector<8x128xf32>
      %c0_19 = arith.constant 0 : index
      %c0_20 = arith.constant 0 : index
      %54 = vector.load %arg4[%c0_19, %c0_20] : memref<8x128xf32, #tpu.memory_space<vmem>>, vector<8x128xf32>
      tpu.vector_store %arg4[%c0_19, %c0_20], %53 {strides = array<i32>} : memref<8x128xf32, #tpu.memory_space<vmem>>, vector<8x128xf32>,
    } else {
    }
    return
  }
  func.func @transform_0(%arg0: i32) -> (i32, i32) {
    %c0_i32 = arith.constant 0 : i32
    %c0_i32_0 = arith.constant 0 : i32
    return %arg0, %c0_i32 : i32, i32
  }
  func.func @transform_1(%arg0: i32) -> (i32, i32) {
    %c0_i32 = arith.constant 0 : i32
    %c0_i32_0 = arith.constant 0 : i32
    return %arg0, %c0_i32 : i32, i32
  }
  func.func @transform_2(%arg0: i32) -> (i32, i32) {
    %c0_i32 = arith.constant 0 : i32
    %c0_i32_0 = arith.constant 0 : i32
    return %c0_i32, %arg0 : i32, i32
  }
  func.func @transform_3(%arg0: i32) -> (i32, i32) {
    %c0_i32 = arith.constant 0 : i32
    %c0_i32_0 = arith.constant 0 : i32
    return %arg0, %c0_i32 : i32, i32
  }
}

</mosaic_0001>

<llo_original>
// kernel: tpu_custom_call.1
$region0: #{tpu_custom_call.1}
  #allocation0 [shape = 'u32[]', space=smem, size = 0x4, offset = 0x4, fixed_abs, tag = 'smem constant byte address 0x4 - core index']
  #allocation1 [shape = 'u32[72,128]{1,0:T(1,128)}', space=vmem, size = 0x9000, scoped, tag = 'internal scratch']
  %s0 = inlined_call_operand.hbm [shape: f32[8,32], index: 0, kind: input, shape index: {}]
  %s1 = inlined_call_operand.hbm [shape: f32[8,32], index: 1, kind: input, shape index: {}]
  %s2 = inlined_call_operand.vmem [shape: f32[1,8], index: 2, kind: input, shape index: {}]
  %s3 = inlined_call_operand.hbm [shape: f32[8,128], index: 3, kind: output, shape index: {}]
  %s4 = sld [smem:[#allocation0]]
  $region38: #{tpu_custom_call.1} parent=0
    _
  %s6 = ssub.s32 1, %s4
  %s7 = scalar_select 0, %s6, %s4
  $region1: #{tpu_custom_call.1} parent=0
    #allocation2 [shape = 'u8[65536]{0}', space=vmem, size = 0x10000, scoped, tag = 'input window, operand 0, single buffered']
    #allocation3 [shape = 's32[1]{0}', space=sflag, size = 0x4, scoped, tag = 'scoped memory for tpu_custom_call.1']
    #allocation4 [shape = 's32[1]{0}', space=sflag, size = 0x4, scoped, tag = 'scoped memory for tpu_custom_call.1']
    #allocation5 [shape = 'u8[65536]{0}', space=vmem, size = 0x10000, scoped, tag = 'input window, operand 1, single buffered']
    #allocation6 [shape = 's32[1]{0}', space=sflag, size = 0x4, scoped, tag = 'scoped memory for tpu_custom_call.1']
    #allocation7 [shape = 'u8[4096]{0}', space=vmem, size = 0x1000, scoped, tag = 'output window, operand 0, single buffered']
    %8 = vsyncpa [#allocation3], 0
    %9 = vsyncpa [#allocation6], 0
    %10 = vsyncpa [#allocation4], 0
    // Predicated region
    $region2: #{tpu_custom_call.1} parent=1 // pred_check
      _
    $region3: #{tpu_custom_call.1} parent=1 // pred_check_branch
      %12 = sbr.rel (0) target = $region5
    $region4: #{tpu_custom_call.1} parent=1 // pred_region
      %14 = vsyncadd [#allocation3], 1920
      %s15 = sshll.u32 %s0, 4
      %s16 = int_to_ptr.hbm [resolvable:$true] %s15
      %s17 = sshll.u32 [#allocation2], 4
      %s18 = int_to_ptr.vmem [resolvable:$true] %s17
      %23 = dma.hbm_to_vmem [thread:$0]  %s16, 128, %s18, [#allocation3], 128, 128, 8
    $region5: #{tpu_custom_call.1} parent=1 // pred_fallthru
      _
    // Predicated region
    $region6: #{tpu_custom_call.1} parent=1 // pred_check
      _
    $region7: #{tpu_custom_call.1} parent=1 // pred_check_branch
      %25 = sbr.rel (0) target = $region9
    $region8: #{tpu_custom_call.1} parent=1 // pred_region
      %27 = vsyncadd [#allocation6], 1920
      %s28 = sshll.u32 %s1, 4
      %s29 = int_to_ptr.hbm [resolvable:$true] %s28
      %s30 = sshll.u32 [#allocation5], 4
      %s31 = int_to_ptr.vmem [resolvable:$true] %s30
      %36 = dma.hbm_to_vmem [thread:$0]  %s29, 128, %s31, [#allocation6], 128, 128, 8
    $region9: #{tpu_custom_call.1} parent=1 // pred_fallthru
      _
    // Predicated region
    $region10: #{tpu_custom_call.1} parent=1 // pred_check
      _
    $region11: #{tpu_custom_call.1} parent=1 // pred_check_branch
      %38 = sbr.rel (0) target = $region13
    $region12: #{tpu_custom_call.1} parent=1 // pred_region
      _
    $region13: #{tpu_custom_call.1} parent=1 // pred_fallthru
      _
    // Predicated region
    $region14: #{tpu_custom_call.1} parent=1 // pred_check
      _
    $region15: #{tpu_custom_call.1} parent=1 // pred_check_branch
      %40 = sbr.rel (0) target = $region17
    $region16: #{tpu_custom_call.1} parent=1 // pred_region
      %42 = dma.done [#allocation3], 2048
    $region17: #{tpu_custom_call.1} parent=1 // pred_fallthru
      _
    // Predicated region
    $region18: #{tpu_custom_call.1} parent=1 // pred_check
      _
    $region19: #{tpu_custom_call.1} parent=1 // pred_check_branch
      %44 = sbr.rel (0) target = $region21
    $region20: #{tpu_custom_call.1} parent=1 // pred_region
      %46 = dma.done [#allocation6], 2048
    $region21: #{tpu_custom_call.1} parent=1 // pred_fallthru
      _
    %v47 = vld [vmem:[#allocation2] sm:$0xff]
    %v48 = vld [vmem:[#allocation2 + $0x8] sm:$0xff]
    %v49 = vld [vmem:[#allocation2 + $0x10] sm:$0xff]
    %v50 = vld [vmem:[#allocation2 + $0x18] sm:$0xff]
    %v51 = vld [vmem:[#allocation2 + $0x20] sm:$0xff]
    %v52 = vld [vmem:[#allocation2 + $0x28] sm:$0xff]
    %v53 = vld [vmem:[#allocation2 + $0x30] sm:$0xff]
    %v54 = vld [vmem:[#allocation2 + $0x38] sm:$0xff]
    %v55 = vld [vmem:[#allocation2 + $0x40] sm:$0xff]
    %v56 = vld [vmem:[#allocation2 + $0x48] sm:$0xff]
    %v57 = vld [vmem:[#allocation2 + $0x50] sm:$0xff]
    %v58 = vld [vmem:[#allocation2 + $0x58] sm:$0xff]
    %v59 = vld [vmem:[#allocation2 + $0x60] sm:$0xff]
    %v60 = vld [vmem:[#allocation2 + $0x68] sm:$0xff]
    %v61 = vld [vmem:[#allocation2 + $0x70] sm:$0xff]
    %v62 = vld [vmem:[#allocation2 + $0x78] sm:$0xff]
    %v63 = vld [vmem:[#allocation5] sm:$0xff]
    %v64 = vld [vmem:[#allocation5 + $0x8] sm:$0xff]
    %v65 = vld [vmem:[#allocation5 + $0x10] sm:$0xff]
    %v66 = vld [vmem:[#allocation5 + $0x18] sm:$0xff]
    %v67 = vld [vmem:[#allocation5 + $0x20] sm:$0xff]
    %v68 = vld [vmem:[#allocation5 + $0x28] sm:$0xff]
    %v69 = vld [vmem:[#allocation5 + $0x30] sm:$0xff]
    %v70 = vld [vmem:[#allocation5 + $0x38] sm:$0xff]
    %v71 = vld [vmem:[#allocation5 + $0x40] sm:$0xff]
    %v72 = vld [vmem:[#allocation5 + $0x48] sm:$0xff]
    %v73 = vld [vmem:[#allocation5 + $0x50] sm:$0xff]
    %v74 = vld [vmem:[#allocation5 + $0x58] sm:$0xff]
    %v75 = vld [vmem:[#allocation5 + $0x60] sm:$0xff]
    %v76 = vld [vmem:[#allocation5 + $0x68] sm:$0xff]
    %v77 = vld [vmem:[#allocation5 + $0x70] sm:$0xff]
    %v78 = vld [vmem:[#allocation5 + $0x78] sm:$0xff]
    %v79 = vsub.f32 %v47, %v63
    %v80 = vsub.f32 %v48, %v64
    %v81 = vsub.f32 %v49, %v65
    %v82 = vsub.f32 %v50, %v66
    %v83 = vsub.f32 %v51, %v67
    %v84 = vsub.f32 %v52, %v68
    %v85 = vsub.f32 %v53, %v69
    %v86 = vsub.f32 %v54, %v70
    %v87 = vsub.f32 %v55, %v71
    %v88 = vsub.f32 %v56, %v72
    %v89 = vsub.f32 %v57, %v73
    %v90 = vsub.f32 %v58, %v74
    %v91 = vsub.f32 %v59, %v75
    %v92 = vsub.f32 %v60, %v76
    %v93 = vsub.f32 %v61, %v77
    %v94 = vsub.f32 %v62, %v78
    %v95 = vmul.f32 %v79, %v79
    %v96 = vmul.f32 %v80, %v80
    %v97 = vmul.f32 %v81, %v81
    %v98 = vmul.f32 %v82, %v82
    %v99 = vmul.f32 %v83, %v83
    %v100 = vmul.f32 %v84, %v84
    %v101 = vmul.f32 %v85, %v85
    %v102 = vmul.f32 %v86, %v86
    %v103 = vmul.f32 %v87, %v87
    %v104 = vmul.f32 %v88, %v88
    %v105 = vmul.f32 %v89, %v89
    %v106 = vmul.f32 %v90, %v90
    %v107 = vmul.f32 %v91, %v91
    %v108 = vmul.f32 %v92, %v92
    %v109 = vmul.f32 %v93, %v93
    %v110 = vmul.f32 %v94, %v94
    %vm111 = vcmask 261120
    %v112 = vsel %vm111, %v95, 0.0
    %113 = vadd.xlane.f32.xlu0 %v112
    %v114 = vpop.xlane.xlu0 %113
    %v115 = vsel %vm111, %v96, 0.0
    %116 = vadd.xlane.f32.xlu0 %v115
    %v117 = vpop.xlane.xlu0 %116
    %v118 = vsel %vm111, %v97, 0.0
    %119 = vadd.xlane.f32.xlu0 %v118
    %v120 = vpop.xlane.xlu0 %119
    %v121 = vsel %vm111, %v98, 0.0
    %122 = vadd.xlane.f32.xlu0 %v121
    %v123 = vpop.xlane.xlu0 %122
    %v124 = vsel %vm111, %v99, 0.0
    %125 = vadd.xlane.f32.xlu0 %v124
    %v126 = vpop.xlane.xlu0 %125
    %v127 = vsel %vm111, %v100, 0.0
    %128 = vadd.xlane.f32.xlu0 %v127
    %v129 = vpop.xlane.xlu0 %128
    %v130 = vsel %vm111, %v101, 0.0
    %131 = vadd.xlane.f32.xlu0 %v130
    %v132 = vpop.xlane.xlu0 %131
    %v133 = vsel %vm111, %v102, 0.0
    %134 = vadd.xlane.f32.xlu0 %v133
    %v135 = vpop.xlane.xlu0 %134
    %v136 = vsel %vm111, %v103, 0.0
    %137 = vadd.xlane.f32.xlu0 %v136
    %v138 = vpop.xlane.xlu0 %137
    %v139 = vsel %vm111, %v104, 0.0
    %140 = vadd.xlane.f32.xlu0 %v139
    %v141 = vpop.xlane.xlu0 %140
    %v142 = vsel %vm111, %v105, 0.0
    %143 = vadd.xlane.f32.xlu0 %v142
    %v144 = vpop.xlane.xlu0 %143
    %v145 = vsel %vm111, %v106, 0.0
    %146 = vadd.xlane.f32.xlu0 %v145
    %v147 = vpop.xlane.xlu0 %146
    %v148 = vsel %vm111, %v107, 0.0
    %149 = vadd.xlane.f32.xlu0 %v148
    %v150 = vpop.xlane.xlu0 %149
    %v151 = vsel %vm111, %v108, 0.0
    %152 = vadd.xlane.f32.xlu0 %v151
    %v153 = vpop.xlane.xlu0 %152
    %v154 = vsel %vm111, %v109, 0.0
    %155 = vadd.xlane.f32.xlu0 %v154
    %v156 = vpop.xlane.xlu0 %155
    %v157 = vsel %vm111, %v110, 0.0
    %158 = vadd.xlane.f32.xlu0 %v157
    %v159 = vpop.xlane.xlu0 %158
    %v160 = vrsqrt.pop %v114
    %v161 = vmul.f32 %v160, %v114
    %v162 = vmul.f32 %v161, %v160
    %v163 = vmul.f32 0.5, %v162
    %v164 = vsub.f32 1.5, %v163
    %v165 = vmul.f32 %v160, %v164
    %v166 = vmul.f32 %v114, %v165
    %vm167 = vcmp.eq.f32.partialorder %v114, inf
    %v168 = vsel %vm167, %v114, %v166
    %vm169 = vcmp.eq.f32.partialorder %v114, 0.0
    %v170 = vand.u32 %v114, 2147483648
    %v171 = vsel %vm169, %v170, %v168
    %v172 = vrsqrt.pop %v117
    %v173 = vmul.f32 %v172, %v117
    %v174 = vmul.f32 %v173, %v172
    %v175 = vmul.f32 0.5, %v174
    %v176 = vsub.f32 1.5, %v175
    %v177 = vmul.f32 %v172, %v176
    %v178 = vmul.f32 %v117, %v177
    %vm179 = vcmp.eq.f32.partialorder %v117, inf
    %v180 = vsel %vm179, %v117, %v178
    %vm181 = vcmp.eq.f32.partialorder %v117, 0.0
    %v182 = vand.u32 %v117, 2147483648
    %v183 = vsel %vm181, %v182, %v180
    %v184 = vrsqrt.pop %v120
    %v185 = vmul.f32 %v184, %v120
    %v186 = vmul.f32 %v185, %v184
    %v187 = vmul.f32 0.5, %v186
    %v188 = vsub.f32 1.5, %v187
    %v189 = vmul.f32 %v184, %v188
    %v190 = vmul.f32 %v120, %v189
    %vm191 = vcmp.eq.f32.partialorder %v120, inf
    %v192 = vsel %vm191, %v120, %v190
    %vm193 = vcmp.eq.f32.partialorder %v120, 0.0
    %v194 = vand.u32 %v120, 2147483648
    %v195 = vsel %vm193, %v194, %v192
    %v196 = vrsqrt.pop %v123
    %v197 = vmul.f32 %v196, %v123
    %v198 = vmul.f32 %v197, %v196
    %v199 = vmul.f32 0.5, %v198
    %v200 = vsub.f32 1.5, %v199
    %v201 = vmul.f32 %v196, %v200
    %v202 = vmul.f32 %v123, %v201
    %vm203 = vcmp.eq.f32.partialorder %v123, inf
    %v204 = vsel %vm203, %v123, %v202
    %vm205 = vcmp.eq.f32.partialorder %v123, 0.0
    %v206 = vand.u32 %v123, 2147483648
    %v207 = vsel %vm205, %v206, %v204
    %v208 = vrsqrt.pop %v126
    %v209 = vmul.f32 %v208, %v126
    %v210 = vmul.f32 %v209, %v208
    %v211 = vmul.f32 0.5, %v210
    %v212 = vsub.f32 1.5, %v211
    %v213 = vmul.f32 %v208, %v212
    %v214 = vmul.f32 %v126, %v213
    %vm215 = vcmp.eq.f32.partialorder %v126, inf
    %v216 = vsel %vm215, %v126, %v214
    %vm217 = vcmp.eq.f32.partialorder %v126, 0.0
    %v218 = vand.u32 %v126, 2147483648
    %v219 = vsel %vm217, %v218, %v216
    %v220 = vrsqrt.pop %v129
    %v221 = vmul.f32 %v220, %v129
    %v222 = vmul.f32 %v221, %v220
    %v223 = vmul.f32 0.5, %v222
    %v224 = vsub.f32 1.5, %v223
    %v225 = vmul.f32 %v220, %v224
    %v226 = vmul.f32 %v129, %v225
    %vm227 = vcmp.eq.f32.partialorder %v129, inf
    %v228 = vsel %vm227, %v129, %v226
    %vm229 = vcmp.eq.f32.partialorder %v129, 0.0
    %v230 = vand.u32 %v129, 2147483648
    %v231 = vsel %vm229, %v230, %v228
    %v232 = vrsqrt.pop %v132
    %v233 = vmul.f32 %v232, %v132
    %v234 = vmul.f32 %v233, %v232
    %v235 = vmul.f32 0.5, %v234
    %v236 = vsub.f32 1.5, %v235
    %v237 = vmul.f32 %v232, %v236
    %v238 = vmul.f32 %v132, %v237
    %vm239 = vcmp.eq.f32.partialorder %v132, inf
    %v240 = vsel %vm239, %v132, %v238
    %vm241 = vcmp.eq.f32.partialorder %v132, 0.0
    %v242 = vand.u32 %v132, 2147483648
    %v243 = vsel %vm241, %v242, %v240
    %v244 = vrsqrt.pop %v135
    %v245 = vmul.f32 %v244, %v135
    %v246 = vmul.f32 %v245, %v244
    %v247 = vmul.f32 0.5, %v246
    %v248 = vsub.f32 1.5, %v247
    %v249 = vmul.f32 %v244, %v248
    %v250 = vmul.f32 %v135, %v249
    %vm251 = vcmp.eq.f32.partialorder %v135, inf
    %v252 = vsel %vm251, %v135, %v250
    %vm253 = vcmp.eq.f32.partialorder %v135, 0.0
    %v254 = vand.u32 %v135, 2147483648
    %v255 = vsel %vm253, %v254, %v252
    %v256 = vrsqrt.pop %v138
    %v257 = vmul.f32 %v256, %v138
    %v258 = vmul.f32 %v257, %v256
    %v259 = vmul.f32 0.5, %v258
    %v260 = vsub.f32 1.5, %v259
    %v261 = vmul.f32 %v256, %v260
    %v262 = vmul.f32 %v138, %v261
    %vm263 = vcmp.eq.f32.partialorder %v138, inf
    %v264 = vsel %vm263, %v138, %v262
    %vm265 = vcmp.eq.f32.partialorder %v138, 0.0
    %v266 = vand.u32 %v138, 2147483648
    %v267 = vsel %vm265, %v266, %v264
    %v268 = vrsqrt.pop %v141
    %v269 = vmul.f32 %v268, %v141
    %v270 = vmul.f32 %v269, %v268
    %v271 = vmul.f32 0.5, %v270
    %v272 = vsub.f32 1.5, %v271
    %v273 = vmul.f32 %v268, %v272
    %v274 = vmul.f32 %v141, %v273
    %vm275 = vcmp.eq.f32.partialorder %v141, inf
    %v276 = vsel %vm275, %v141, %v274
    %vm277 = vcmp.eq.f32.partialorder %v141, 0.0
    %v278 = vand.u32 %v141, 2147483648
    %v279 = vsel %vm277, %v278, %v276
    %v280 = vrsqrt.pop %v144
    %v281 = vmul.f32 %v280, %v144
    %v282 = vmul.f32 %v281, %v280
    %v283 = vmul.f32 0.5, %v282
    %v284 = vsub.f32 1.5, %v283
    %v285 = vmul.f32 %v280, %v284
    %v286 = vmul.f32 %v144, %v285
    %vm287 = vcmp.eq.f32.partialorder %v144, inf
    %v288 = vsel %vm287, %v144, %v286
    %vm289 = vcmp.eq.f32.partialorder %v144, 0.0
    %v290 = vand.u32 %v144, 2147483648
    %v291 = vsel %vm289, %v290, %v288
    %v292 = vrsqrt.pop %v147
    %v293 = vmul.f32 %v292, %v147
    %v294 = vmul.f32 %v293, %v292
    %v295 = vmul.f32 0.5, %v294
    %v296 = vsub.f32 1.5, %v295
    %v297 = vmul.f32 %v292, %v296
    %v298 = vmul.f32 %v147, %v297
    %vm299 = vcmp.eq.f32.partialorder %v147, inf
    %v300 = vsel %vm299, %v147, %v298
    %vm301 = vcmp.eq.f32.partialorder %v147, 0.0
    %v302 = vand.u32 %v147, 2147483648
    %v303 = vsel %vm301, %v302, %v300
    %v304 = vrsqrt.pop %v150
    %v305 = vmul.f32 %v304, %v150
    %v306 = vmul.f32 %v305, %v304
    %v307 = vmul.f32 0.5, %v306
    %v308 = vsub.f32 1.5, %v307
    %v309 = vmul.f32 %v304, %v308
    %v310 = vmul.f32 %v150, %v309
    %vm311 = vcmp.eq.f32.partialorder %v150, inf
    %v312 = vsel %vm311, %v150, %v310
    %vm313 = vcmp.eq.f32.partialorder %v150, 0.0
    %v314 = vand.u32 %v150, 2147483648
    %v315 = vsel %vm313, %v314, %v312
    %v316 = vrsqrt.pop %v153
    %v317 = vmul.f32 %v316, %v153
    %v318 = vmul.f32 %v317, %v316
    %v319 = vmul.f32 0.5, %v318
    %v320 = vsub.f32 1.5, %v319
    %v321 = vmul.f32 %v316, %v320
    %v322 = vmul.f32 %v153, %v321
    %vm323 = vcmp.eq.f32.partialorder %v153, inf
    %v324 = vsel %vm323, %v153, %v322
    %vm325 = vcmp.eq.f32.partialorder %v153, 0.0
    %v326 = vand.u32 %v153, 2147483648
    %v327 = vsel %vm325, %v326, %v324
    %v328 = vrsqrt.pop %v156
    %v329 = vmul.f32 %v328, %v156
    %v330 = vmul.f32 %v329, %v328
    %v331 = vmul.f32 0.5, %v330
    %v332 = vsub.f32 1.5, %v331
    %v333 = vmul.f32 %v328, %v332
    %v334 = vmul.f32 %v156, %v333
    %vm335 = vcmp.eq.f32.partialorder %v156, inf
    %v336 = vsel %vm335, %v156, %v334
    %vm337 = vcmp.eq.f32.partialorder %v156, 0.0
    %v338 = vand.u32 %v156, 2147483648
    %v339 = vsel %vm337, %v338, %v336
    %v340 = vrsqrt.pop %v159
    %v341 = vmul.f32 %v340, %v159
    %v342 = vmul.f32 %v341, %v340
    %v343 = vmul.f32 0.5, %v342
    %v344 = vsub.f32 1.5, %v343
    %v345 = vmul.f32 %v340, %v344
    %v346 = vmul.f32 %v159, %v345
    %vm347 = vcmp.eq.f32.partialorder %v159, inf
    %v348 = vsel %vm347, %v159, %v346
    %vm349 = vcmp.eq.f32.partialorder %v159, 0.0
    %v350 = vand.u32 %v159, 2147483648
    %v351 = vsel %vm349, %v350, %v348
    %v352 = vsub.f32 1.0, %v171
    %v353 = vsub.f32 1.0, %v183
    %v354 = vsub.f32 1.0, %v195
    %v355 = vsub.f32 1.0, %v207
    %v356 = vsub.f32 1.0, %v219
    %v357 = vsub.f32 1.0, %v231
    %v358 = vsub.f32 1.0, %v243
    %v359 = vsub.f32 1.0, %v255
    %v360 = vsub.f32 1.0, %v267
    %v361 = vsub.f32 1.0, %v279
    %v362 = vsub.f32 1.0, %v291
    %v363 = vsub.f32 1.0, %v303
    %v364 = vsub.f32 1.0, %v315
    %v365 = vsub.f32 1.0, %v327
    %v366 = vsub.f32 1.0, %v339
    %v367 = vsub.f32 1.0, %v351
    %v368 = vmax.f32 %v352, 0.0
    %v369 = vmax.f32 %v353, 0.0
    %v370 = vmax.f32 %v354, 0.0
    %v371 = vmax.f32 %v355, 0.0
    %v372 = vmax.f32 %v356, 0.0
    %v373 = vmax.f32 %v357, 0.0
    %v374 = vmax.f32 %v358, 0.0
    %v375 = vmax.f32 %v359, 0.0
    %v376 = vmax.f32 %v360, 0.0
    %v377 = vmax.f32 %v361, 0.0
    %v378 = vmax.f32 %v362, 0.0
    %v379 = vmax.f32 %v363, 0.0
    %v380 = vmax.f32 %v364, 0.0
    %v381 = vmax.f32 %v365, 0.0
    %v382 = vmax.f32 %v366, 0.0
    %v383 = vmax.f32 %v367, 0.0
    %v384 = vmul.f32 %v368, %v368
    %v385 = vmul.f32 %v369, %v369
    %v386 = vmul.f32 %v370, %v370
    %v387 = vmul.f32 %v371, %v371
    %v388 = vmul.f32 %v372, %v372
    %v389 = vmul.f32 %v373, %v373
    %v390 = vmul.f32 %v374, %v374
    %v391 = vmul.f32 %v375, %v375
    %v392 = vmul.f32 %v376, %v376
    %v393 = vmul.f32 %v377, %v377
    %v394 = vmul.f32 %v378, %v378
    %v395 = vmul.f32 %v379, %v379
    %v396 = vmul.f32 %v380, %v380
    %v397 = vmul.f32 %v381, %v381
    %v398 = vmul.f32 %v382, %v382
    %v399 = vmul.f32 %v383, %v383
    %v400 = vld [vmem:[%s2] sm:$0x1]
    %p401 = scmp.lt.s32.totalorder 0, 0
    // Predicated region
    $region22: #{tpu_custom_call.1} parent=1 // pred_check
      %p402 = pneg %p401
    $region23: #{tpu_custom_call.1} parent=1 // pred_check_branch
      %404 = sbr.rel (%p402) target = $region25
    $region24: #{tpu_custom_call.1} parent=1 // pred_region
      %v405 = vsub.f32 %v114, %v384
      %v406 = vsub.f32 %v117, %v385
      %v407 = vsub.f32 %v120, %v386
      %v408 = vsub.f32 %v123, %v387
      %v409 = vsub.f32 %v126, %v388
      %v410 = vsub.f32 %v129, %v389
      %v411 = vsub.f32 %v132, %v390
      %v412 = vsub.f32 %v135, %v391
      %v413 = vsub.f32 %v138, %v392
      %v414 = vsub.f32 %v141, %v393
      %v415 = vsub.f32 %v144, %v394
      %v416 = vsub.f32 %v147, %v395
      %v417 = vsub.f32 %v150, %v396
      %v418 = vsub.f32 %v153, %v397
      %v419 = vsub.f32 %v156, %v398
      %v420 = vsub.f32 %v159, %v399
      %v421 = vand.u32 %v420, 4294901760
      %422 = vmatpush.msra.mxu0 %v421
      %v423 = vand.u32 %v419, 4294901760
      %424 = vmatpush.msra.mxu0 %v423
      %v425 = vand.u32 %v418, 4294901760
      %426 = vmatpush.msra.mxu0 %v425
      %v427 = vand.u32 %v417, 4294901760
      %428 = vmatpush.msra.mxu0 %v427
      %v429 = vand.u32 %v416, 4294901760
      %430 = vmatpush.msra.mxu0 %v429
      %v431 = vand.u32 %v415, 4294901760
      %432 = vmatpush.msra.mxu0 %v431
      %v433 = vand.u32 %v414, 4294901760
      %434 = vmatpush.msra.mxu0 %v433
      %v435 = vand.u32 %v413, 4294901760
      %436 = vmatpush.msra.mxu0 %v435
      %v437 = vand.u32 %v412, 4294901760
      %438 = vmatpush.msra.mxu0 %v437
      %v439 = vand.u32 %v411, 4294901760
      %440 = vmatpush.msra.mxu0 %v439
      %v441 = vand.u32 %v410, 4294901760
      %442 = vmatpush.msra.mxu0 %v441
      %v443 = vand.u32 %v409, 4294901760
      %444 = vmatpush.msra.mxu0 %v443
      %v445 = vand.u32 %v408, 4294901760
      %446 = vmatpush.msra.mxu0 %v445
      %v447 = vand.u32 %v407, 4294901760
      %448 = vmatpush.msra.mxu0 %v447
      %v449 = vand.u32 %v406, 4294901760
      %450 = vmatpush.msra.mxu0 %v449
      %v451 = vand.u32 %v405, 4294901760
      %452 = vmatpush.msra.mxu0 %v451
      %v453 = vand.u32 %v400, 4294901760
      %v454 = vsub.f32 %v400, %v453
      %v455 = vand.u32 %v454, 4294901760
      %v456 = vsub.f32 %v454, %v455
      %v457 = vand.u32 %v456, 4294901760
      %458 = vmatmul.f32.gmra.mxu0 %v457
      %v459 = vpop.f32.mrf.mxu0
      %v460 = vadd.f32 0.0, %v459
      %461 = vdwg.mxu0
      %v462 = vand.u32 %v420, 4294901760
      %v463 = vsub.f32 %v420, %v462
      %v464 = vand.u32 %v463, 4294901760
      %v465 = vsub.f32 %v463, %v464
      %v466 = vand.u32 %v465, 4294901760
      %467 = vmatpush.msra.mxu0 %v466
      %v468 = vand.u32 %v419, 4294901760
      %v469 = vsub.f32 %v419, %v468
      %v470 = vand.u32 %v469, 4294901760
      %v471 = vsub.f32 %v469, %v470
      %v472 = vand.u32 %v471, 4294901760
      %473 = vmatpush.msra.mxu0 %v472
      %v474 = vand.u32 %v418, 4294901760
      %v475 = vsub.f32 %v418, %v474
      %v476 = vand.u32 %v475, 4294901760
      %v477 = vsub.f32 %v475, %v476
      %v478 = vand.u32 %v477, 4294901760
      %479 = vmatpush.msra.mxu0 %v478
      %v480 = vand.u32 %v417, 4294901760
      %v481 = vsub.f32 %v417, %v480
      %v482 = vand.u32 %v481, 4294901760
      %v483 = vsub.f32 %v481, %v482
      %v484 = vand.u32 %v483, 4294901760
      %485 = vmatpush.msra.mxu0 %v484
      %v486 = vand.u32 %v416, 4294901760
      %v487 = vsub.f32 %v416, %v486
      %v488 = vand.u32 %v487, 4294901760
      %v489 = vsub.f32 %v487, %v488
      %v490 = vand.u32 %v489, 4294901760
      %491 = vmatpush.msra.mxu0 %v490
      %v492 = vand.u32 %v415, 4294901760
      %v493 = vsub.f32 %v415, %v492
      %v494 = vand.u32 %v493, 4294901760
      %v495 = vsub.f32 %v493, %v494
      %v496 = vand.u32 %v495, 4294901760
      %497 = vmatpush.msra.mxu0 %v496
      %v498 = vand.u32 %v414, 4294901760
      %v499 = vsub.f32 %v414, %v498
      %v500 = vand.u32 %v499, 4294901760
      %v501 = vsub.f32 %v499, %v500
      %v502 = vand.u32 %v501, 4294901760
      %503 = vmatpush.msra.mxu0 %v502
      %v504 = vand.u32 %v413, 4294901760
      %v505 = vsub.f32 %v413, %v504
      %v506 = vand.u32 %v505, 4294901760
      %v507 = vsub.f32 %v505, %v506
      %v508 = vand.u32 %v507, 4294901760
      %509 = vmatpush.msra.mxu0 %v508
      %v510 = vand.u32 %v412, 4294901760
      %v511 = vsub.f32 %v412, %v510
      %v512 = vand.u32 %v511, 4294901760
      %v513 = vsub.f32 %v511, %v512
      %v514 = vand.u32 %v513, 4294901760
      %515 = vmatpush.msra.mxu0 %v514
      %v516 = vand.u32 %v411, 4294901760
      %v517 = vsub.f32 %v411, %v516
      %v518 = vand.u32 %v517, 4294901760
      %v519 = vsub.f32 %v517, %v518
      %v520 = vand.u32 %v519, 4294901760
      %521 = vmatpush.msra.mxu0 %v520
      %v522 = vand.u32 %v410, 4294901760
      %v523 = vsub.f32 %v410, %v522
      %v524 = vand.u32 %v523, 4294901760
      %v525 = vsub.f32 %v523, %v524
      %v526 = vand.u32 %v525, 4294901760
      %527 = vmatpush.msra.mxu0 %v526
      %v528 = vand.u32 %v409, 4294901760
      %v529 = vsub.f32 %v409, %v528
      %v530 = vand.u32 %v529, 4294901760
      %v531 = vsub.f32 %v529, %v530
      %v532 = vand.u32 %v531, 4294901760
      %533 = vmatpush.msra.mxu0 %v532
      %v534 = vand.u32 %v408, 4294901760
      %v535 = vsub.f32 %v408, %v534
      %v536 = vand.u32 %v535, 4294901760
      %v537 = vsub.f32 %v535, %v536
      %v538 = vand.u32 %v537, 4294901760
      %539 = vmatpush.msra.mxu0 %v538
      %v540 = vand.u32 %v407, 4294901760
      %v541 = vsub.f32 %v407, %v540
      %v542 = vand.u32 %v541, 4294901760
      %v543 = vsub.f32 %v541, %v542
      %v544 = vand.u32 %v543, 4294901760
      %545 = vmatpush.msra.mxu0 %v544
      %v546 = vand.u32 %v406, 4294901760
      %v547 = vsub.f32 %v406, %v546
      %v548 = vand.u32 %v547, 4294901760
      %v549 = vsub.f32 %v547, %v548
      %v550 = vand.u32 %v549, 4294901760
      %551 = vmatpush.msra.mxu0 %v550
      %v552 = vand.u32 %v405, 4294901760
      %v553 = vsub.f32 %v405, %v552
      %v554 = vand.u32 %v553, 4294901760
      %v555 = vsub.f32 %v553, %v554
      %v556 = vand.u32 %v555, 4294901760
      %557 = vmatpush.msra.mxu0 %v556
      %v558 = vand.u32 %v400, 4294901760
      %559 = vmatmul.f32.gmra.mxu0 %v558
      %v560 = vpop.f32.mrf.mxu0
      %v561 = vadd.f32 %v460, %v560
      %562 = vdwg.mxu0
      %v563 = vand.u32 %v420, 4294901760
      %v564 = vsub.f32 %v420, %v563
      %565 = vmatpush.msra.mxu0 %v564
      %v566 = vand.u32 %v419, 4294901760
      %v567 = vsub.f32 %v419, %v566
      %568 = vmatpush.msra.mxu0 %v567
      %v569 = vand.u32 %v418, 4294901760
      %v570 = vsub.f32 %v418, %v569
      %571 = vmatpush.msra.mxu0 %v570
      %v572 = vand.u32 %v417, 4294901760
      %v573 = vsub.f32 %v417, %v572
      %574 = vmatpush.msra.mxu0 %v573
      %v575 = vand.u32 %v416, 4294901760
      %v576 = vsub.f32 %v416, %v575
      %577 = vmatpush.msra.mxu0 %v576
      %v578 = vand.u32 %v415, 4294901760
      %v579 = vsub.f32 %v415, %v578
      %580 = vmatpush.msra.mxu0 %v579
      %v581 = vand.u32 %v414, 4294901760
      %v582 = vsub.f32 %v414, %v581
      %583 = vmatpush.msra.mxu0 %v582
      %v584 = vand.u32 %v413, 4294901760
      %v585 = vsub.f32 %v413, %v584
      %586 = vmatpush.msra.mxu0 %v585
      %v587 = vand.u32 %v412, 4294901760
      %v588 = vsub.f32 %v412, %v587
      %589 = vmatpush.msra.mxu0 %v588
      %v590 = vand.u32 %v411, 4294901760
      %v591 = vsub.f32 %v411, %v590
      %592 = vmatpush.msra.mxu0 %v591
      %v593 = vand.u32 %v410, 4294901760
      %v594 = vsub.f32 %v410, %v593
      %595 = vmatpush.msra.mxu0 %v594
      %v596 = vand.u32 %v409, 4294901760
      %v597 = vsub.f32 %v409, %v596
      %598 = vmatpush.msra.mxu0 %v597
      %v599 = vand.u32 %v408, 4294901760
      %v600 = vsub.f32 %v408, %v599
      %601 = vmatpush.msra.mxu0 %v600
      %v602 = vand.u32 %v407, 4294901760
      %v603 = vsub.f32 %v407, %v602
      %604 = vmatpush.msra.mxu0 %v603
      %v605 = vand.u32 %v406, 4294901760
      %v606 = vsub.f32 %v406, %v605
      %607 = vmatpush.msra.mxu0 %v606
      %v608 = vand.u32 %v405, 4294901760
      %v609 = vsub.f32 %v405, %v608
      %610 = vmatpush.msra.mxu0 %v609
      %v611 = vand.u32 %v400, 4294901760
      %v612 = vsub.f32 %v400, %v611
      %613 = vmatmul.f32.gmra.mxu0 %v612
      %v614 = vpop.f32.mrf.mxu0
      %v615 = vadd.f32 %v561, %v614
      %616 = vdwg.mxu0
      %v617 = vand.u32 %v420, 4294901760
      %618 = vmatpush.msra.mxu0 %v617
      %v619 = vand.u32 %v419, 4294901760
      %620 = vmatpush.msra.mxu0 %v619
      %v621 = vand.u32 %v418, 4294901760
      %622 = vmatpush.msra.mxu0 %v621
      %v623 = vand.u32 %v417, 4294901760
      %624 = vmatpush.msra.mxu0 %v623
      %v625 = vand.u32 %v416, 4294901760
      %626 = vmatpush.msra.mxu0 %v625
      %v627 = vand.u32 %v415, 4294901760
      %628 = vmatpush.msra.mxu0 %v627
      %v629 = vand.u32 %v414, 4294901760
      %630 = vmatpush.msra.mxu0 %v629
      %v631 = vand.u32 %v413, 4294901760
      %632 = vmatpush.msra.mxu0 %v631
      %v633 = vand.u32 %v412, 4294901760
      %634 = vmatpush.msra.mxu0 %v633
      %v635 = vand.u32 %v411, 4294901760
      %636 = vmatpush.msra.mxu0 %v635
      %v637 = vand.u32 %v410, 4294901760
      %638 = vmatpush.msra.mxu0 %v637
      %v639 = vand.u32 %v409, 4294901760
      %640 = vmatpush.msra.mxu0 %v639
      %v641 = vand.u32 %v408, 4294901760
      %642 = vmatpush.msra.mxu0 %v641
      %v643 = vand.u32 %v407, 4294901760
      %644 = vmatpush.msra.mxu0 %v643
      %v645 = vand.u32 %v406, 4294901760
      %646 = vmatpush.msra.mxu0 %v645
      %v647 = vand.u32 %v405, 4294901760
      %648 = vmatpush.msra.mxu0 %v647
      %v649 = vand.u32 %v400, 4294901760
      %v650 = vsub.f32 %v400, %v649
      %v651 = vand.u32 %v650, 4294901760
      %652 = vmatmul.f32.gmra.mxu0 %v651
      %v653 = vpop.f32.mrf.mxu0
      %v654 = vadd.f32 %v615, %v653
      %655 = vdwg.mxu0
      %v656 = vand.u32 %v420, 4294901760
      %v657 = vsub.f32 %v420, %v656
      %v658 = vand.u32 %v657, 4294901760
      %659 = vmatpush.msra.mxu0 %v658
      %v660 = vand.u32 %v419, 4294901760
      %v661 = vsub.f32 %v419, %v660
      %v662 = vand.u32 %v661, 4294901760
      %663 = vmatpush.msra.mxu0 %v662
      %v664 = vand.u32 %v418, 4294901760
      %v665 = vsub.f32 %v418, %v664
      %v666 = vand.u32 %v665, 4294901760
      %667 = vmatpush.msra.mxu0 %v666
      %v668 = vand.u32 %v417, 4294901760
      %v669 = vsub.f32 %v417, %v668
      %v670 = vand.u32 %v669, 4294901760
      %671 = vmatpush.msra.mxu0 %v670
      %v672 = vand.u32 %v416, 4294901760
      %v673 = vsub.f32 %v416, %v672
      %v674 = vand.u32 %v673, 4294901760
      %675 = vmatpush.msra.mxu0 %v674
      %v676 = vand.u32 %v415, 4294901760
      %v677 = vsub.f32 %v415, %v676
      %v678 = vand.u32 %v677, 4294901760
      %679 = vmatpush.msra.mxu0 %v678
      %v680 = vand.u32 %v414, 4294901760
      %v681 = vsub.f32 %v414, %v680
      %v682 = vand.u32 %v681, 4294901760
      %683 = vmatpush.msra.mxu0 %v682
      %v684 = vand.u32 %v413, 4294901760
      %v685 = vsub.f32 %v413, %v684
      %v686 = vand.u32 %v685, 4294901760
      %687 = vmatpush.msra.mxu0 %v686
      %v688 = vand.u32 %v412, 4294901760
      %v689 = vsub.f32 %v412, %v688
      %v690 = vand.u32 %v689, 4294901760
      %691 = vmatpush.msra.mxu0 %v690
      %v692 = vand.u32 %v411, 4294901760
      %v693 = vsub.f32 %v411, %v692
      %v694 = vand.u32 %v693, 4294901760
      %695 = vmatpush.msra.mxu0 %v694
      %v696 = vand.u32 %v410, 4294901760
      %v697 = vsub.f32 %v410, %v696
      %v698 = vand.u32 %v697, 4294901760
      %699 = vmatpush.msra.mxu0 %v698
      %v700 = vand.u32 %v409, 4294901760
      %v701 = vsub.f32 %v409, %v700
      %v702 = vand.u32 %v701, 4294901760
      %703 = vmatpush.msra.mxu0 %v702
      %v704 = vand.u32 %v408, 4294901760
      %v705 = vsub.f32 %v408, %v704
      %v706 = vand.u32 %v705, 4294901760
      %707 = vmatpush.msra.mxu0 %v706
      %v708 = vand.u32 %v407, 4294901760
      %v709 = vsub.f32 %v407, %v708
      %v710 = vand.u32 %v709, 4294901760
      %711 = vmatpush.msra.mxu0 %v710
      %v712 = vand.u32 %v406, 4294901760
      %v713 = vsub.f32 %v406, %v712
      %v714 = vand.u32 %v713, 4294901760
      %715 = vmatpush.msra.mxu0 %v714
      %v716 = vand.u32 %v405, 4294901760
      %v717 = vsub.f32 %v405, %v716
      %v718 = vand.u32 %v717, 4294901760
      %719 = vmatpush.msra.mxu0 %v718
      %v720 = vand.u32 %v400, 4294901760
      %721 = vmatmul.f32.gmra.mxu0 %v720
      %v722 = vpop.f32.mrf.mxu0
      %v723 = vadd.f32 %v654, %v722
      %724 = vdwg.mxu0
      %v725 = vand.u32 %v420, 4294901760
      %726 = vmatpush.msra.mxu0 %v725
      %v727 = vand.u32 %v419, 4294901760
      %728 = vmatpush.msra.mxu0 %v727
      %v729 = vand.u32 %v418, 4294901760
      %730 = vmatpush.msra.mxu0 %v729
      %v731 = vand.u32 %v417, 4294901760
      %732 = vmatpush.msra.mxu0 %v731
      %v733 = vand.u32 %v416, 4294901760
      %734 = vmatpush.msra.mxu0 %v733
      %v735 = vand.u32 %v415, 4294901760
      %736 = vmatpush.msra.mxu0 %v735
      %v737 = vand.u32 %v414, 4294901760
      %738 = vmatpush.msra.mxu0 %v737
      %v739 = vand.u32 %v413, 4294901760
      %740 = vmatpush.msra.mxu0 %v739
      %v741 = vand.u32 %v412, 4294901760
      %742 = vmatpush.msra.mxu0 %v741
      %v743 = vand.u32 %v411, 4294901760
      %744 = vmatpush.msra.mxu0 %v743
      %v745 = vand.u32 %v410, 4294901760
      %746 = vmatpush.msra.mxu0 %v745
      %v747 = vand.u32 %v409, 4294901760
      %748 = vmatpush.msra.mxu0 %v747
      %v749 = vand.u32 %v408, 4294901760
      %750 = vmatpush.msra.mxu0 %v749
      %v751 = vand.u32 %v407, 4294901760
      %752 = vmatpush.msra.mxu0 %v751
      %v753 = vand.u32 %v406, 4294901760
      %754 = vmatpush.msra.mxu0 %v753
      %v755 = vand.u32 %v405, 4294901760
      %756 = vmatpush.msra.mxu0 %v755
      %v757 = vand.u32 %v400, 4294901760
      %758 = vmatmul.f32.gmra.mxu0 %v757
      %v759 = vpop.f32.mrf.mxu0
      %v760 = vadd.f32 %v723, %v759
      %761 = vdwg.mxu0
      %v762 = vadd.f32 %v760, 0.0
      %s763 = vtos %v762
      %vm764 = vcmask 7168
      %v765 = vsel %vm764, %v384, 0.0
      %v766 = vsel %vm764, %v385, 0.0
      %v767 = vadd.f32 %v765, %v766
      %v768 = vsel %vm764, %v386, 0.0
      %v769 = vadd.f32 %v767, %v768
      %v770 = vsel %vm764, %v387, 0.0
      %v771 = vadd.f32 %v769, %v770
      %v772 = vsel %vm764, %v388, 0.0
      %v773 = vadd.f32 %v771, %v772
      %v774 = vsel %vm764, %v389, 0.0
      %v775 = vadd.f32 %v773, %v774
      %v776 = vsel %vm764, %v390, 0.0
      %v777 = vadd.f32 %v775, %v776
      %v778 = vsel %vm764, %v391, 0.0
      %v779 = vadd.f32 %v777, %v778
      %v780 = vsel %vm764, %v392, 0.0
      %v781 = vadd.f32 %v779, %v780
      %v782 = vsel %vm764, %v393, 0.0
      %v783 = vadd.f32 %v781, %v782
      %v784 = vsel %vm764, %v394, 0.0
      %v785 = vadd.f32 %v783, %v784
      %v786 = vsel %vm764, %v395, 0.0
      %v787 = vadd.f32 %v785, %v786
      %v788 = vsel %vm764, %v396, 0.0
      %v789 = vadd.f32 %v787, %v788
      %v790 = vsel %vm764, %v397, 0.0
      %v791 = vadd.f32 %v789, %v790
      %v792 = vsel %vm764, %v398, 0.0
      %v793 = vadd.f32 %v791, %v792
      %v794 = vsel %vm764, %v399, 0.0
      %v795 = vadd.f32 %v793, %v794
      %796 = vadd.xlane.f32.xlu0 %v795
      %v797 = vpop.xlane.xlu0 %796
      %v798 = vrot.slane %v797, 4
      %v799 = vadd.f32 %v797, %v798
      %v800 = vrot.slane %v799, 2
      %v801 = vadd.f32 %v799, %v800
      %v802 = vrot.slane %v801, 1
      %v803 = vadd.f32 %v801, %v802
      %s804 = vtos %v803
      %s805 = sadd.f32 %s763, %s804
      %v806 = vlaneseq
      %v807 = vshrl.u32 %v806, 7
      %v808 = vlaneseq
      %v809 = vand.u32 %v808, 127
      %vm810 = vcmp.eq.s32.totalorder %v807, 0
      %vm811 = vcmp.eq.s32.totalorder %v809, 0
      %vm812 = vmand %vm810, %vm811
      %v813 = vstv %s805
      %v814 = vsel %vm812, %v813, 0.0
      %815 = vst [vmem:[#allocation7] sm:$0xff] %v814
    $region25: #{tpu_custom_call.1} parent=1 // pred_fallthru
      _
    %p816 = scmp.eq.s32.totalorder 0, 0
    // Predicated region
    $region26: #{tpu_custom_call.1} parent=1 // pred_check
      %p817 = pneg %p816
    $region27: #{tpu_custom_call.1} parent=1 // pred_check_branch
      %819 = sbr.rel (%p817) target = $region29
    $region28: #{tpu_custom_call.1} parent=1 // pred_region
      %s820 = smul.u32 0, 128
      %s821 = ssub.s32 8, %s820
      %v822 = vlaneseq
      %v823 = vshrl.u32 %v822, 7
      %v824 = vadd.s32 %v823, 8
      %v825 = vadd.s32 %v823, 16
      %v826 = vadd.s32 %v823, 24
      %v827 = vadd.s32 %v823, 32
      %v828 = vadd.s32 %v823, 40
      %v829 = vadd.s32 %v823, 48
      %v830 = vadd.s32 %v823, 56
      %v831 = vadd.s32 %v823, 64
      %v832 = vadd.s32 %v823, 72
      %v833 = vadd.s32 %v823, 80
      %v834 = vadd.s32 %v823, 88
      %v835 = vadd.s32 %v823, 96
      %v836 = vadd.s32 %v823, 104
      %v837 = vadd.s32 %v823, 112
      %v838 = vadd.s32 %v823, 120
      %v839 = vstv %s821
      %vm840 = vcmp.lt.s32.totalorder %v823, %v839
      %vm841 = vcmp.lt.s32.totalorder %v824, %v839
      %vm842 = vcmp.lt.s32.totalorder %v825, %v839
      %vm843 = vcmp.lt.s32.totalorder %v826, %v839
      %vm844 = vcmp.lt.s32.totalorder %v827, %v839
      %vm845 = vcmp.lt.s32.totalorder %v828, %v839
      %vm846 = vcmp.lt.s32.totalorder %v829, %v839
      %vm847 = vcmp.lt.s32.totalorder %v830, %v839
      %vm848 = vcmp.lt.s32.totalorder %v831, %v839
      %vm849 = vcmp.lt.s32.totalorder %v832, %v839
      %vm850 = vcmp.lt.s32.totalorder %v833, %v839
      %vm851 = vcmp.lt.s32.totalorder %v834, %v839
      %vm852 = vcmp.lt.s32.totalorder %v835, %v839
      %vm853 = vcmp.lt.s32.totalorder %v836, %v839
      %vm854 = vcmp.lt.s32.totalorder %v837, %v839
      %vm855 = vcmp.lt.s32.totalorder %v838, %v839
      %v856 = vlaneseq
      %v857 = vand.u32 %v856, 127
      %vm858 = vcmp.lt.s32.totalorder %v857, %v839
      %v859 = vsel %vm858, %v400, 0.0
      %v860 = vsel %vm840, %v114, 0.0
      %v861 = vsel %vm841, %v117, 0.0
      %v862 = vsel %vm842, %v120, 0.0
      %v863 = vsel %vm843, %v123, 0.0
      %v864 = vsel %vm844, %v126, 0.0
      %v865 = vsel %vm845, %v129, 0.0
      %v866 = vsel %vm846, %v132, 0.0
      %v867 = vsel %vm847, %v135, 0.0
      %v868 = vsel %vm848, %v138, 0.0
      %v869 = vsel %vm849, %v141, 0.0
      %v870 = vsel %vm850, %v144, 0.0
      %v871 = vsel %vm851, %v147, 0.0
      %v872 = vsel %vm852, %v150, 0.0
      %v873 = vsel %vm853, %v153, 0.0
      %v874 = vsel %vm854, %v156, 0.0
      %v875 = vsel %vm855, %v159, 0.0
      %v876 = vsel %vm840, %v384, 0.0
      %v877 = vsel %vm841, %v385, 0.0
      %v878 = vsel %vm842, %v386, 0.0
      %v879 = vsel %vm843, %v387, 0.0
      %v880 = vsel %vm844, %v388, 0.0
      %v881 = vsel %vm845, %v389, 0.0
      %v882 = vsel %vm846, %v390, 0.0
      %v883 = vsel %vm847, %v391, 0.0
      %v884 = vsel %vm848, %v392, 0.0
      %v885 = vsel %vm849, %v393, 0.0
      %v886 = vsel %vm850, %v394, 0.0
      %v887 = vsel %vm851, %v395, 0.0
      %v888 = vsel %vm852, %v396, 0.0
      %v889 = vsel %vm853, %v397, 0.0
      %v890 = vsel %vm854, %v398, 0.0
      %v891 = vsel %vm855, %v399, 0.0
      %v892 = vsub.f32 %v860, %v876
      %v893 = vsub.f32 %v861, %v877
      %v894 = vsub.f32 %v862, %v878
      %v895 = vsub.f32 %v863, %v879
      %v896 = vsub.f32 %v864, %v880
      %v897 = vsub.f32 %v865, %v881
      %v898 = vsub.f32 %v866, %v882
      %v899 = vsub.f32 %v867, %v883
      %v900 = vsub.f32 %v868, %v884
      %v901 = vsub.f32 %v869, %v885
      %v902 = vsub.f32 %v870, %v886
      %v903 = vsub.f32 %v871, %v887
      %v904 = vsub.f32 %v872, %v888
      %v905 = vsub.f32 %v873, %v889
      %v906 = vsub.f32 %v874, %v890
      %v907 = vsub.f32 %v875, %v891
      %v908 = vand.u32 %v907, 4294901760
      %909 = vmatpush.msra.mxu0 %v908
      %v910 = vand.u32 %v906, 4294901760
      %911 = vmatpush.msra.mxu0 %v910
      %v912 = vand.u32 %v905, 4294901760
      %913 = vmatpush.msra.mxu0 %v912
      %v914 = vand.u32 %v904, 4294901760
      %915 = vmatpush.msra.mxu0 %v914
      %v916 = vand.u32 %v903, 4294901760
      %917 = vmatpush.msra.mxu0 %v916
      %v918 = vand.u32 %v902, 4294901760
      %919 = vmatpush.msra.mxu0 %v918
      %v920 = vand.u32 %v901, 4294901760
      %921 = vmatpush.msra.mxu0 %v920
      %v922 = vand.u32 %v900, 4294901760
      %923 = vmatpush.msra.mxu0 %v922
      %v924 = vand.u32 %v899, 4294901760
      %925 = vmatpush.msra.mxu0 %v924
      %v926 = vand.u32 %v898, 4294901760
      %927 = vmatpush.msra.mxu0 %v926
      %v928 = vand.u32 %v897, 4294901760
      %929 = vmatpush.msra.mxu0 %v928
      %v930 = vand.u32 %v896, 4294901760
      %931 = vmatpush.msra.mxu0 %v930
      %v932 = vand.u32 %v895, 4294901760
      %933 = vmatpush.msra.mxu0 %v932
      %v934 = vand.u32 %v894, 4294901760
      %935 = vmatpush.msra.mxu0 %v934
      %v936 = vand.u32 %v893, 4294901760
      %937 = vmatpush.msra.mxu0 %v936
      %v938 = vand.u32 %v892, 4294901760
      %939 = vmatpush.msra.mxu0 %v938
      %v940 = vand.u32 %v859, 4294901760
      %v941 = vsub.f32 %v859, %v940
      %v942 = vand.u32 %v941, 4294901760
      %v943 = vsub.f32 %v941, %v942
      %v944 = vand.u32 %v943, 4294901760
      %945 = vmatmul.f32.gmra.mxu0 %v944
      %v946 = vpop.f32.mrf.mxu0
      %v947 = vadd.f32 0.0, %v946
      %948 = vdwg.mxu0
      %v949 = vand.u32 %v907, 4294901760
      %v950 = vsub.f32 %v907, %v949
      %v951 = vand.u32 %v950, 4294901760
      %v952 = vsub.f32 %v950, %v951
      %v953 = vand.u32 %v952, 4294901760
      %954 = vmatpush.msra.mxu0 %v953
      %v955 = vand.u32 %v906, 4294901760
      %v956 = vsub.f32 %v906, %v955
      %v957 = vand.u32 %v956, 4294901760
      %v958 = vsub.f32 %v956, %v957
      %v959 = vand.u32 %v958, 4294901760
      %960 = vmatpush.msra.mxu0 %v959
      %v961 = vand.u32 %v905, 4294901760
      %v962 = vsub.f32 %v905, %v961
      %v963 = vand.u32 %v962, 4294901760
      %v964 = vsub.f32 %v962, %v963
      %v965 = vand.u32 %v964, 4294901760
      %966 = vmatpush.msra.mxu0 %v965
      %v967 = vand.u32 %v904, 4294901760
      %v968 = vsub.f32 %v904, %v967
      %v969 = vand.u32 %v968, 4294901760
      %v970 = vsub.f32 %v968, %v969
      %v971 = vand.u32 %v970, 4294901760
      %972 = vmatpush.msra.mxu0 %v971
      %v973 = vand.u32 %v903, 4294901760
      %v974 = vsub.f32 %v903, %v973
      %v975 = vand.u32 %v974, 4294901760
      %v976 = vsub.f32 %v974, %v975
      %v977 = vand.u32 %v976, 4294901760
      %978 = vmatpush.msra.mxu0 %v977
      %v979 = vand.u32 %v902, 4294901760
      %v980 = vsub.f32 %v902, %v979
      %v981 = vand.u32 %v980, 4294901760
      %v982 = vsub.f32 %v980, %v981
      %v983 = vand.u32 %v982, 4294901760
      %984 = vmatpush.msra.mxu0 %v983
      %v985 = vand.u32 %v901, 4294901760
      %v986 = vsub.f32 %v901, %v985
      %v987 = vand.u32 %v986, 4294901760
      %v988 = vsub.f32 %v986, %v987
      %v989 = vand.u32 %v988, 4294901760
      %990 = vmatpush.msra.mxu0 %v989
      %v991 = vand.u32 %v900, 4294901760
      %v992 = vsub.f32 %v900, %v991
      %v993 = vand.u32 %v992, 4294901760
      %v994 = vsub.f32 %v992, %v993
      %v995 = vand.u32 %v994, 4294901760
      %996 = vmatpush.msra.mxu0 %v995
      %v997 = vand.u32 %v899, 4294901760
      %v998 = vsub.f32 %v899, %v997
      %v999 = vand.u32 %v998, 4294901760
      %v1000 = vsub.f32 %v998, %v999
      %v1001 = vand.u32 %v1000, 4294901760
      %1002 = vmatpush.msra.mxu0 %v1001
      %v1003 = vand.u32 %v898, 4294901760
      %v1004 = vsub.f32 %v898, %v1003
      %v1005 = vand.u32 %v1004, 4294901760
      %v1006 = vsub.f32 %v1004, %v1005
      %v1007 = vand.u32 %v1006, 4294901760
      %1008 = vmatpush.msra.mxu0 %v1007
      %v1009 = vand.u32 %v897, 4294901760
      %v1010 = vsub.f32 %v897, %v1009
      %v1011 = vand.u32 %v1010, 4294901760
      %v1012 = vsub.f32 %v1010, %v1011
      %v1013 = vand.u32 %v1012, 4294901760
      %1014 = vmatpush.msra.mxu0 %v1013
      %v1015 = vand.u32 %v896, 4294901760
      %v1016 = vsub.f32 %v896, %v1015
      %v1017 = vand.u32 %v1016, 4294901760
      %v1018 = vsub.f32 %v1016, %v1017
      %v1019 = vand.u32 %v1018, 4294901760
      %1020 = vmatpush.msra.mxu0 %v1019
      %v1021 = vand.u32 %v895, 4294901760
      %v1022 = vsub.f32 %v895, %v1021
      %v1023 = vand.u32 %v1022, 4294901760
      %v1024 = vsub.f32 %v1022, %v1023
      %v1025 = vand.u32 %v1024, 4294901760
      %1026 = vmatpush.msra.mxu0 %v1025
      %v1027 = vand.u32 %v894, 4294901760
      %v1028 = vsub.f32 %v894, %v1027
      %v1029 = vand.u32 %v1028, 4294901760
      %v1030 = vsub.f32 %v1028, %v1029
      %v1031 = vand.u32 %v1030, 4294901760
      %1032 = vmatpush.msra.mxu0 %v1031
      %v1033 = vand.u32 %v893, 4294901760
      %v1034 = vsub.f32 %v893, %v1033
      %v1035 = vand.u32 %v1034, 4294901760
      %v1036 = vsub.f32 %v1034, %v1035
      %v1037 = vand.u32 %v1036, 4294901760
      %1038 = vmatpush.msra.mxu0 %v1037
      %v1039 = vand.u32 %v892, 4294901760
      %v1040 = vsub.f32 %v892, %v1039
      %v1041 = vand.u32 %v1040, 4294901760
      %v1042 = vsub.f32 %v1040, %v1041
      %v1043 = vand.u32 %v1042, 4294901760
      %1044 = vmatpush.msra.mxu0 %v1043
      %v1045 = vand.u32 %v859, 4294901760
      %1046 = vmatmul.f32.gmra.mxu0 %v1045
      %v1047 = vpop.f32.mrf.mxu0
      %v1048 = vadd.f32 %v947, %v1047
      %1049 = vdwg.mxu0
      %v1050 = vand.u32 %v907, 4294901760
      %v1051 = vsub.f32 %v907, %v1050
      %1052 = vmatpush.msra.mxu0 %v1051
      %v1053 = vand.u32 %v906, 4294901760
      %v1054 = vsub.f32 %v906, %v1053
      %1055 = vmatpush.msra.mxu0 %v1054
      %v1056 = vand.u32 %v905, 4294901760
      %v1057 = vsub.f32 %v905, %v1056
      %1058 = vmatpush.msra.mxu0 %v1057
      %v1059 = vand.u32 %v904, 4294901760
      %v1060 = vsub.f32 %v904, %v1059
      %1061 = vmatpush.msra.mxu0 %v1060
      %v1062 = vand.u32 %v903, 4294901760
      %v1063 = vsub.f32 %v903, %v1062
      %1064 = vmatpush.msra.mxu0 %v1063
      %v1065 = vand.u32 %v902, 4294901760
      %v1066 = vsub.f32 %v902, %v1065
      %1067 = vmatpush.msra.mxu0 %v1066
      %v1068 = vand.u32 %v901, 4294901760
      %v1069 = vsub.f32 %v901, %v1068
      %1070 = vmatpush.msra.mxu0 %v1069
      %v1071 = vand.u32 %v900, 4294901760
      %v1072 = vsub.f32 %v900, %v1071
      %1073 = vmatpush.msra.mxu0 %v1072
      %v1074 = vand.u32 %v899, 4294901760
      %v1075 = vsub.f32 %v899, %v1074
      %1076 = vmatpush.msra.mxu0 %v1075
      %v1077 = vand.u32 %v898, 4294901760
      %v1078 = vsub.f32 %v898, %v1077
      %1079 = vmatpush.msra.mxu0 %v1078
      %v1080 = vand.u32 %v897, 4294901760
      %v1081 = vsub.f32 %v897, %v1080
      %1082 = vmatpush.msra.mxu0 %v1081
      %v1083 = vand.u32 %v896, 4294901760
      %v1084 = vsub.f32 %v896, %v1083
      %1085 = vmatpush.msra.mxu0 %v1084
      %v1086 = vand.u32 %v895, 4294901760
      %v1087 = vsub.f32 %v895, %v1086
      %1088 = vmatpush.msra.mxu0 %v1087
      %v1089 = vand.u32 %v894, 4294901760
      %v1090 = vsub.f32 %v894, %v1089
      %1091 = vmatpush.msra.mxu0 %v1090
      %v1092 = vand.u32 %v893, 4294901760
      %v1093 = vsub.f32 %v893, %v1092
      %1094 = vmatpush.msra.mxu0 %v1093
      %v1095 = vand.u32 %v892, 4294901760
      %v1096 = vsub.f32 %v892, %v1095
      %1097 = vmatpush.msra.mxu0 %v1096
      %v1098 = vand.u32 %v859, 4294901760
      %v1099 = vsub.f32 %v859, %v1098
      %1100 = vmatmul.f32.gmra.mxu0 %v1099
      %v1101 = vpop.f32.mrf.mxu0
      %v1102 = vadd.f32 %v1048, %v1101
      %1103 = vdwg.mxu0
      %v1104 = vand.u32 %v907, 4294901760
      %1105 = vmatpush.msra.mxu0 %v1104
      %v1106 = vand.u32 %v906, 4294901760
      %1107 = vmatpush.msra.mxu0 %v1106
      %v1108 = vand.u32 %v905, 4294901760
      %1109 = vmatpush.msra.mxu0 %v1108
      %v1110 = vand.u32 %v904, 4294901760
      %1111 = vmatpush.msra.mxu0 %v1110
      %v1112 = vand.u32 %v903, 4294901760
      %1113 = vmatpush.msra.mxu0 %v1112
      %v1114 = vand.u32 %v902, 4294901760
      %1115 = vmatpush.msra.mxu0 %v1114
      %v1116 = vand.u32 %v901, 4294901760
      %1117 = vmatpush.msra.mxu0 %v1116
      %v1118 = vand.u32 %v900, 4294901760
      %1119 = vmatpush.msra.mxu0 %v1118
      %v1120 = vand.u32 %v899, 4294901760
      %1121 = vmatpush.msra.mxu0 %v1120
      %v1122 = vand.u32 %v898, 4294901760
      %1123 = vmatpush.msra.mxu0 %v1122
      %v1124 = vand.u32 %v897, 4294901760
      %1125 = vmatpush.msra.mxu0 %v1124
      %v1126 = vand.u32 %v896, 4294901760
      %1127 = vmatpush.msra.mxu0 %v1126
      %v1128 = vand.u32 %v895, 4294901760
      %1129 = vmatpush.msra.mxu0 %v1128
      %v1130 = vand.u32 %v894, 4294901760
      %1131 = vmatpush.msra.mxu0 %v1130
      %v1132 = vand.u32 %v893, 4294901760
      %1133 = vmatpush.msra.mxu0 %v1132
      %v1134 = vand.u32 %v892, 4294901760
      %1135 = vmatpush.msra.mxu0 %v1134
      %v1136 = vand.u32 %v859, 4294901760
      %v1137 = vsub.f32 %v859, %v1136
      %v1138 = vand.u32 %v1137, 4294901760
      %1139 = vmatmul.f32.gmra.mxu0 %v1138
      %v1140 = vpop.f32.mrf.mxu0
      %v1141 = vadd.f32 %v1102, %v1140
      %1142 = vdwg.mxu0
      %v1143 = vand.u32 %v907, 4294901760
      %v1144 = vsub.f32 %v907, %v1143
      %v1145 = vand.u32 %v1144, 4294901760
      %1146 = vmatpush.msra.mxu0 %v1145
      %v1147 = vand.u32 %v906, 4294901760
      %v1148 = vsub.f32 %v906, %v1147
      %v1149 = vand.u32 %v1148, 4294901760
      %1150 = vmatpush.msra.mxu0 %v1149
      %v1151 = vand.u32 %v905, 4294901760
      %v1152 = vsub.f32 %v905, %v1151
      %v1153 = vand.u32 %v1152, 4294901760
      %1154 = vmatpush.msra.mxu0 %v1153
      %v1155 = vand.u32 %v904, 4294901760
      %v1156 = vsub.f32 %v904, %v1155
      %v1157 = vand.u32 %v1156, 4294901760
      %1158 = vmatpush.msra.mxu0 %v1157
      %v1159 = vand.u32 %v903, 4294901760
      %v1160 = vsub.f32 %v903, %v1159
      %v1161 = vand.u32 %v1160, 4294901760
      %1162 = vmatpush.msra.mxu0 %v1161
      %v1163 = vand.u32 %v902, 4294901760
      %v1164 = vsub.f32 %v902, %v1163
      %v1165 = vand.u32 %v1164, 4294901760
      %1166 = vmatpush.msra.mxu0 %v1165
      %v1167 = vand.u32 %v901, 4294901760
      %v1168 = vsub.f32 %v901, %v1167
      %v1169 = vand.u32 %v1168, 4294901760
      %1170 = vmatpush.msra.mxu0 %v1169
      %v1171 = vand.u32 %v900, 4294901760
      %v1172 = vsub.f32 %v900, %v1171
      %v1173 = vand.u32 %v1172, 4294901760
      %1174 = vmatpush.msra.mxu0 %v1173
      %v1175 = vand.u32 %v899, 4294901760
      %v1176 = vsub.f32 %v899, %v1175
      %v1177 = vand.u32 %v1176, 4294901760
      %1178 = vmatpush.msra.mxu0 %v1177
      %v1179 = vand.u32 %v898, 4294901760
      %v1180 = vsub.f32 %v898, %v1179
      %v1181 = vand.u32 %v1180, 4294901760
      %1182 = vmatpush.msra.mxu0 %v1181
      %v1183 = vand.u32 %v897, 4294901760
      %v1184 = vsub.f32 %v897, %v1183
      %v1185 = vand.u32 %v1184, 4294901760
      %1186 = vmatpush.msra.mxu0 %v1185
      %v1187 = vand.u32 %v896, 4294901760
      %v1188 = vsub.f32 %v896, %v1187
      %v1189 = vand.u32 %v1188, 4294901760
      %1190 = vmatpush.msra.mxu0 %v1189
      %v1191 = vand.u32 %v895, 4294901760
      %v1192 = vsub.f32 %v895, %v1191
      %v1193 = vand.u32 %v1192, 4294901760
      %1194 = vmatpush.msra.mxu0 %v1193
      %v1195 = vand.u32 %v894, 4294901760
      %v1196 = vsub.f32 %v894, %v1195
      %v1197 = vand.u32 %v1196, 4294901760
      %1198 = vmatpush.msra.mxu0 %v1197
      %v1199 = vand.u32 %v893, 4294901760
      %v1200 = vsub.f32 %v893, %v1199
      %v1201 = vand.u32 %v1200, 4294901760
      %1202 = vmatpush.msra.mxu0 %v1201
      %v1203 = vand.u32 %v892, 4294901760
      %v1204 = vsub.f32 %v892, %v1203
      %v1205 = vand.u32 %v1204, 4294901760
      %1206 = vmatpush.msra.mxu0 %v1205
      %v1207 = vand.u32 %v859, 4294901760
      %1208 = vmatmul.f32.gmra.mxu0 %v1207
      %v1209 = vpop.f32.mrf.mxu0
      %v1210 = vadd.f32 %v1141, %v1209
      %1211 = vdwg.mxu0
      %v1212 = vand.u32 %v907, 4294901760
      %1213 = vmatpush.msra.mxu0 %v1212
      %v1214 = vand.u32 %v906, 4294901760
      %1215 = vmatpush.msra.mxu0 %v1214
      %v1216 = vand.u32 %v905, 4294901760
      %1217 = vmatpush.msra.mxu0 %v1216
      %v1218 = vand.u32 %v904, 4294901760
      %1219 = vmatpush.msra.mxu0 %v1218
      %v1220 = vand.u32 %v903, 4294901760
      %1221 = vmatpush.msra.mxu0 %v1220
      %v1222 = vand.u32 %v902, 4294901760
      %1223 = vmatpush.msra.mxu0 %v1222
      %v1224 = vand.u32 %v901, 4294901760
      %1225 = vmatpush.msra.mxu0 %v1224
      %v1226 = vand.u32 %v900, 4294901760
      %1227 = vmatpush.msra.mxu0 %v1226
      %v1228 = vand.u32 %v899, 4294901760
      %1229 = vmatpush.msra.mxu0 %v1228
      %v1230 = vand.u32 %v898, 4294901760
      %1231 = vmatpush.msra.mxu0 %v1230
      %v1232 = vand.u32 %v897, 4294901760
      %1233 = vmatpush.msra.mxu0 %v1232
      %v1234 = vand.u32 %v896, 4294901760
      %1235 = vmatpush.msra.mxu0 %v1234
      %v1236 = vand.u32 %v895, 4294901760
      %1237 = vmatpush.msra.mxu0 %v1236
      %v1238 = vand.u32 %v894, 4294901760
      %1239 = vmatpush.msra.mxu0 %v1238
      %v1240 = vand.u32 %v893, 4294901760
      %1241 = vmatpush.msra.mxu0 %v1240
      %v1242 = vand.u32 %v892, 4294901760
      %1243 = vmatpush.msra.mxu0 %v1242
      %v1244 = vand.u32 %v859, 4294901760
      %1245 = vmatmul.f32.gmra.mxu0 %v1244
      %v1246 = vpop.f32.mrf.mxu0
      %v1247 = vadd.f32 %v1210, %v1246
      %1248 = vdwg.mxu0
      %v1249 = vadd.f32 %v1247, 0.0
      %s1250 = vtos %v1249
      %vm1251 = vcmask 7168
      %v1252 = vsel %vm1251, %v876, 0.0
      %v1253 = vsel %vm1251, %v877, 0.0
      %v1254 = vadd.f32 %v1252, %v1253
      %v1255 = vsel %vm1251, %v878, 0.0
      %v1256 = vadd.f32 %v1254, %v1255
      %v1257 = vsel %vm1251, %v879, 0.0
      %v1258 = vadd.f32 %v1256, %v1257
      %v1259 = vsel %vm1251, %v880, 0.0
      %v1260 = vadd.f32 %v1258, %v1259
      %v1261 = vsel %vm1251, %v881, 0.0
      %v1262 = vadd.f32 %v1260, %v1261
      %v1263 = vsel %vm1251, %v882, 0.0
      %v1264 = vadd.f32 %v1262, %v1263
      %v1265 = vsel %vm1251, %v883, 0.0
      %v1266 = vadd.f32 %v1264, %v1265
      %v1267 = vsel %vm1251, %v884, 0.0
      %v1268 = vadd.f32 %v1266, %v1267
      %v1269 = vsel %vm1251, %v885, 0.0
      %v1270 = vadd.f32 %v1268, %v1269
      %v1271 = vsel %vm1251, %v886, 0.0
      %v1272 = vadd.f32 %v1270, %v1271
      %v1273 = vsel %vm1251, %v887, 0.0
      %v1274 = vadd.f32 %v1272, %v1273
      %v1275 = vsel %vm1251, %v888, 0.0
      %v1276 = vadd.f32 %v1274, %v1275
      %v1277 = vsel %vm1251, %v889, 0.0
      %v1278 = vadd.f32 %v1276, %v1277
      %v1279 = vsel %vm1251, %v890, 0.0
      %v1280 = vadd.f32 %v1278, %v1279
      %v1281 = vsel %vm1251, %v891, 0.0
      %v1282 = vadd.f32 %v1280, %v1281
      %1283 = vadd.xlane.f32.xlu0 %v1282
      %v1284 = vpop.xlane.xlu0 %1283
      %v1285 = vrot.slane %v1284, 4
      %v1286 = vadd.f32 %v1284, %v1285
      %v1287 = vrot.slane %v1286, 2
      %v1288 = vadd.f32 %v1286, %v1287
      %v1289 = vrot.slane %v1288, 1
      %v1290 = vadd.f32 %v1288, %v1289
      %s1291 = vtos %v1290
      %s1292 = sadd.f32 %s1250, %s1291
      %vm1293 = vcmp.eq.s32.totalorder %v823, 0
      %vm1294 = vcmp.eq.s32.totalorder %v857, 0
      %vm1295 = vmand %vm1293, %vm1294
      %v1296 = vstv %s1292
      %v1297 = vsel %vm1295, %v1296, 0.0
      %1298 = vst [vmem:[#allocation7] sm:$0xff] %v1297
    $region29: #{tpu_custom_call.1} parent=1 // pred_fallthru
      _
    // Predicated region
    $region30: #{tpu_custom_call.1} parent=1 // pred_check
      _
    $region31: #{tpu_custom_call.1} parent=1 // pred_check_branch
      %1300 = sbr.rel (0) target = $region33
    $region32: #{tpu_custom_call.1} parent=1 // pred_region
      %1302 = vsyncadd [#allocation4], 0
      %s1304 = sshll.u32 [#allocation7], 4
      %s1305 = int_to_ptr.vmem [resolvable:$true] %s1304
      %s1306 = sshll.u32 %s3, 4
      %s1307 = int_to_ptr.hbm [resolvable:$true] %s1306
      %1309 = dma.vmem_to_hbm [thread:$0]  %s1305, 128, %s1307, [#allocation4]
    $region33: #{tpu_custom_call.1} parent=1 // pred_fallthru
      _
    // Predicated region
    $region34: #{tpu_custom_call.1} parent=1 // pred_check
      _
    $region35: #{tpu_custom_call.1} parent=1 // pred_check_branch
      %1311 = sbr.rel (0) target = $region37
    $region36: #{tpu_custom_call.1} parent=1 // pred_region
      %1313 = dma.done [#allocation4], 128
    $region37: #{tpu_custom_call.1} parent=1 // pred_fallthru
      _
    %1314 = vsyncpa [#allocation3], 1
    %1315 = vsyncpa [#allocation6], 1
    %1316 = vsyncpa [#allocation4], 1

</llo_original>
